<compile_context>
chip_gen: v6e
topology: v6e:2x2x1
jax: 0.10.0
libtpu: 0.0.40
codegen_flags: <defaults>
</compile_context>

<pallas_src>
import functools
import math

import numpy as np
import jax
import jax.numpy as jnp
from jax import lax
from jax.experimental import pallas as pl
from jax.experimental.pallas import tpu as pltpu


# ----------------------------------------------------------------------------
# Constants (derived exactly as in the PyTorch __init__)
# ----------------------------------------------------------------------------
GAUSSIAN_CHANNELS = [3, 2, 1, 1, 3, 4]            # features, uv, depth, opacity, scales, rotations
OPACITY_OFFSET = float(math.log(0.01 / (1.0 - 0.01)))    # inverse_sigmoid(0.01)
SCALES_OFFSET = float(math.log(1.0 / 100.0))
SH_C0_DIV = 2.0 * 0.28209479177387814

_MULS = np.array([0.01] * 3 + [0.01] * 2 + [0.05] * 1 + [0.05] * 1
                 + [0.005] * 3 + [0.005] * 4, dtype=np.float32)
_MULS = _MULS / _MULS.max()
MUL_FEAT = float(_MULS[0])
MUL_UV = float(_MULS[3])
MUL_DEPTH = float(_MULS[5])
MUL_OPACITY = float(_MULS[6])
MUL_SCALES = float(_MULS[7])
MUL_ROT = float(_MULS[10])
FEAT_SCALE = MUL_FEAT / SH_C0_DIV

NSCAL = 16          # per-camera scalars: inv_cx, inv_cy, cx/fx, cy/fy, t(3), R(9)
OUT_C = 14          # packed output channels: xyz(3) feat(3) opa(1) scl(3) rot(4)
LANES = 128


# ----------------------------------------------------------------------------
# In-kernel pixel coordinate generation (replaces the precomputed HBM table)
# ----------------------------------------------------------------------------
def _pixel_coords(tile_idx, r_tile, w):
    """Return (i+0.5, j+0.5) of shape (r_tile, 128) for this pixel tile."""
    row = lax.broadcasted_iota(jnp.int32, (r_tile, LANES), 0)
    lane = lax.broadcasted_iota(jnp.int32, (r_tile, LANES), 1)
    p = (tile_idx * r_tile + row) * LANES + lane            # flat pixel index
    if (w & (w - 1)) == 0:
        # power-of-two width: exact shift / mask (always supported)
        shift = int(w).bit_length() - 1
        j = p >> shift
        i = p & (w - 1)
    else:
        # float-reciprocal estimate + integer fixup (exact for per-camera pixel
        # counts up to ~32M); avoids any vector integer divide.
        q = (p.astype(jnp.float32) * np.float32(1.0 / w)).astype(jnp.int32)
        r = p - q * w
        for _ in range(4):
            hi = r >= w
            q = jnp.where(hi, q + 1, q)
            r = jnp.where(hi, r - w, r)
        for _ in range(4):
            lo = r < 0
            q = jnp.where(lo, q - 1, q)
            r = jnp.where(lo, r + w, r)
        j, i = q, r
    return i.astype(jnp.float32) + 0.5, j.astype(jnp.float32) + 0.5


# ----------------------------------------------------------------------------
# Pallas kernel: one (pixel-tile, camera) pair per grid step
# ----------------------------------------------------------------------------
def _gaussian_kernel(cam_ref, params_ref, out_ref, *, r_tile, w):
    # --- per-camera scalars from the flat SMEM table ---
    g = pl.program_id(1)                 # camera index (inner grid axis)
    base = g * NSCAL
    inv_cx = cam_ref[base + 0]
    inv_cy = cam_ref[base + 1]
    cx_fx = cam_ref[base + 2]            # cx / fx
    cy_fy = cam_ref[base + 3]            # cy / fy
    tx = cam_ref[base + 4]
    ty = cam_ref[base + 5]
    tz = cam_ref[base + 6]
    r00 = cam_ref[base + 7]
    r01 = cam_ref[base + 8]
    r02 = cam_ref[base + 9]
    r10 = cam_ref[base + 10]
    r11 = cam_ref[base + 11]
    r12 = cam_ref[base + 12]
    r20 = cam_ref[base + 13]
    r21 = cam_ref[base + 14]
    r22 = cam_ref[base + 15]

    # --- pixel coordinates generated in-kernel (no HBM table) ---
    i_, j_ = _pixel_coords(pl.program_id(0), r_tile, w)

    # --- uv / directions (zs = -1 folded algebraically) ---
    u = i_ * inv_cx + params_ref[0, 3].astype(jnp.float32) * MUL_UV
    v = j_ * inv_cy + params_ref[0, 4].astype(jnp.float32) * MUL_UV
    xs = (u - 1.0) * cx_fx               # = -(u-1)*cx/fx * zs  with zs = -1
    ys = (1.0 - v) * cy_fy               # =  (v-1)*cy/fy * zs  with zs = -1
    dx = r00 * xs + r01 * ys - r02       # R @ (xs, ys, -1)
    dy = r10 * xs + r11 * ys - r12
    dz = r20 * xs + r21 * ys - r22
    rinv = lax.rsqrt(jnp.maximum(dx * dx + dy * dy + dz * dz, 1e-24))

    # --- xyz = rays_o + depth * normalize(rays_d) ---
    dep = params_ref[0, 5].astype(jnp.float32) * MUL_DEPTH + 1.85
    out_ref[0, 0] = tx + dep * (dx * rinv)
    out_ref[0, 1] = ty + dep * (dy * rinv)
    out_ref[0, 2] = tz + dep * (dz * rinv)

    # --- features ---
    out_ref[0, 3:6] = params_ref[0, 0:3].astype(jnp.float32) * FEAT_SCALE

    # --- opacity ---
    out_ref[0, 6] = jax.nn.sigmoid(
        params_ref[0, 6].astype(jnp.float32) * MUL_OPACITY + OPACITY_OFFSET)

    # --- scales ---
    out_ref[0, 7:10] = jnp.exp(
        params_ref[0, 7:10].astype(jnp.float32) * MUL_SCALES + SCALES_OFFSET)

    # --- rotations: add [1,0,0,0] offset as a scalar add on channel 0 ---
    q0 = params_ref[0, 10].astype(jnp.float32) * MUL_ROT + 1.0
    q1 = params_ref[0, 11].astype(jnp.float32) * MUL_ROT
    q2 = params_ref[0, 12].astype(jnp.float32) * MUL_ROT
    q3 = params_ref[0, 13].astype(jnp.float32) * MUL_ROT
    qinv = lax.rsqrt(jnp.maximum(q0 * q0 + q1 * q1 + q2 * q2 + q3 * q3, 1e-24))
    out_ref[0, 10] = q0 * qinv
    out_ref[0, 11] = q1 * qinv
    out_ref[0, 12] = q2 * qinv
    out_ref[0, 13] = q3 * qinv


# ----------------------------------------------------------------------------
# Wrapper (plain-JAX glue around the kernel)
# ----------------------------------------------------------------------------
def gaussian_converter(local_gaussian_params, cameras, *, rows_per_tile=512):
    B, N, C, h, w = local_gaussian_params.shape
    assert C == sum(GAUSSIAN_CHANNELS)
    BN = B * N
    P = h * w

    # --- pixel-axis tiling: (rows, 128); pick r_tile adaptively to limit pad ---
    r_raw = pl.cdiv(P, LANES)
    if r_raw <= rows_per_tile:
        r_tile = r_raw                                   # single tile == full extent
    else:
        max_rt = max(8, (rows_per_tile // 8) * 8)        # keep (8,128) tiling rule
        r_tile = None
        for rt in range(max_rt, 7, -8):                  # largest tile with <=5% pad
            total = pl.cdiv(r_raw, rt) * rt
            if (total - r_raw) * LANES <= 0.05 * P:
                r_tile = rt
                break
        if r_tile is None:                               # fall back to min-pad tile
            r_tile = min(range(8, max_rt + 1, 8),
                         key=lambda rt: (pl.cdiv(r_raw, rt) * rt, -rt))
    r_total = pl.cdiv(r_raw, r_tile) * r_tile
    num_tiles = r_total // r_tile
    # megacore: ensure >= 2 grid steps so both TensorCores get work on v7x
    if BN * num_tiles < 2 and r_raw >= 16:
        r_tile = pl.cdiv(pl.cdiv(r_raw, 2), 8) * 8
        r_total = pl.cdiv(r_raw, r_tile) * r_tile
        num_tiles = r_total // r_tile
    p_pad = r_total * LANES

    # kernel input layout: (BN, C, rows, 128) channel-first, pixels fill
    # sublanes + lanes; input dtype (f32 or bf16) is preserved, cast in-kernel.
    params = local_gaussian_params.reshape(BN, C, P)
    if p_pad != P:
        params = jnp.pad(params, ((0, 0), (0, 0), (0, p_pad - P)))
    params = params.reshape(BN, C, r_total, LANES)

    # per-camera scalar table (flat 1-D f32 -> tight SMEM, no vector divides)
    cams = cameras.reshape(BN, cameras.shape[-1]).astype(jnp.float32)
    c2w34 = cams[:, :12].reshape(BN, 3, 4)
    Rm = c2w34[:, :, :3]                                  # (BN, 3, 3)
    t = c2w34[:, :, 3]                                    # (BN, 3)
    Hc = cams[:, 16]
    Wc = cams[:, 17]
    fx = cams[:, 12] * h / Hc
    fy = cams[:, 13] * w / Wc
    cx = cams[:, 14] * h / Hc
    cy = cams[:, 15] * w / Wc
    cam_packed = jnp.concatenate(
        [(1.0 / cx)[:, None], (1.0 / cy)[:, None],
         (cx / fx)[:, None], (cy / fy)[:, None],
         t, Rm.reshape(BN, 9)], axis=-1).reshape(BN * NSCAL)

    # explicit VMEM budget: double-buffered in+out blocks, floor 32 MiB
    # (v5e default is only 16), cap 56 MiB (v7x has 64 MiB physical per TC).
    in_block_bytes = C * r_tile * LANES * params.dtype.itemsize
    out_block_bytes = OUT_C * r_tile * LANES * 4
    vmem_limit = int(min(56 << 20,
                         max(32 << 20,
                             2 * (in_block_bytes + out_block_bytes) + (4 << 20))))

    cost = pl.CostEstimate(
        flops=int(70 * BN * p_pad),
        transcendentals=int(7 * BN * p_pad),
        bytes_accessed=int(params.size * params.dtype.itemsize
                           + BN * OUT_C * p_pad * 4
                           + cam_packed.size * 4))

    kernel = functools.partial(_gaussian_kernel, r_tile=r_tile, w=w)

    out = pl.pallas_call(
        kernel,
        out_shape=jax.ShapeDtypeStruct((BN, OUT_C, r_total, LANES), jnp.float32),
        grid=(num_tiles, BN),
        in_specs=[
            pl.BlockSpec(memory_space=pltpu.MemorySpace.SMEM),              # cam scalar table
            pl.BlockSpec((1, C, r_tile, LANES), lambda ti, g: (g, 0, ti, 0)),
        ],
        out_specs=pl.BlockSpec((1, OUT_C, r_tile, LANES),
                               lambda ti, g: (g, 0, ti, 0)),
        compiler_params=pltpu.CompilerParams(
            dimension_semantics=("parallel", "parallel"),
            vmem_limit_bytes=vmem_limit),
        cost_estimate=cost,
    )(cam_packed, params)

    # Back to PyTorch output conventions: per-group slice + transpose.
    # Each group reads only its own channels (contiguous in channel-first) and
    # writes once -> a single extra HBM pass instead of transpose-then-split.
    out = out.reshape(BN, OUT_C, p_pad)

    def group(lo, hi):
        return jnp.transpose(out[:, lo:hi, :P], (0, 2, 1)).reshape(B, N * P, hi - lo)

    xyz = group(0, 3)
    features = group(3, 6).reshape(B, N * P, 1, 3)
    opacity = group(6, 7)
    scales = group(7, 10)
    rotations = group(10, 14)
    return xyz, features, opacity, scales, rotations


# ----------------------------------------------------------------------------
# Pure-JAX reference (mirrors the PyTorch forward) for correctness checking
# ----------------------------------------------------------------------------
def gaussian_converter_ref(local_gaussian_params, cameras):
    B, N, C, h, w = local_gaussian_params.shape
    x = jnp.transpose(local_gaussian_params, (0, 1, 3, 4, 2)).reshape(-1, C)
    x = x * jnp.asarray(_MULS)[None, :]
    splits = np.cumsum(GAUSSIAN_CHANNELS)[:-1]
    features, uv_offset, depth, opacity, scales, rotations = jnp.split(x, splits, axis=-1)

    cams = cameras.reshape(-1, cameras.shape[-1])
    BN = cams.shape[0]
    c2w = jnp.tile(jnp.eye(4, dtype=jnp.float32)[None], (BN, 1, 1))
    c2w = c2w.at[:, :3, :].set(cams[:, :12].reshape(BN, 3, 4))
    fx, fy, cx, cy, H, W = [cams[:, 12 + k:13 + k] for k in range(6)]
    fx, cx = fx * h / H, cx * h / H
    fy, cy = fy * w / W, cy * w / W

    inds = jnp.broadcast_to(jnp.arange(h * w), (BN, h * w))
    i = inds % w + 0.5
    j = inds // w + 0.5
    u = i / cx + uv_offset[..., 0].reshape(BN, h * w)
    v = j / cy + uv_offset[..., 1].reshape(BN, h * w)
    zs = -jnp.ones_like(u)
    xs = -(u - 1.0) * cx / fx * zs
    ys = (v - 1.0) * cy / fy * zs
    directions = jnp.stack((xs, ys, zs), axis=-1)
    d = jnp.einsum('bpd,bkd->bpk', directions, c2w[:, :3, :3],
                   precision=jax.lax.Precision.HIGHEST)
    rays_d = d / jnp.maximum(jnp.linalg.norm(d, axis=-1, keepdims=True), 1e-12)
    rays_o = jnp.broadcast_to(c2w[:, :3, 3][:, None, :], rays_d.shape)
    rays_o = rays_o.reshape(BN * h * w, 3)
    rays_d = rays_d.reshape(BN * h * w, 3)
    depth = depth.reshape(BN * h * w, 1) + 1.85
    xyz = rays_o + depth * rays_d
    features = features.reshape(BN * h * w, -1, 3) / SH_C0_DIV
    opacity = jax.nn.sigmoid(opacity + OPACITY_OFFSET)
    scales = jnp.exp(scales + SCALES_OFFSET)
    rot = rotations + jnp.array([1.0, 0.0, 0.0, 0.0], dtype=jnp.float32)
    rot = rot / jnp.maximum(jnp.linalg.norm(rot, axis=-1, keepdims=True), 1e-12)
    return (xyz.reshape(B, -1, 3), features.reshape(B, -1, 1, 3),
            opacity.reshape(B, -1, 1), scales.reshape(B, -1, 3),
            rot.reshape(B, -1, 4))


def _make_inputs(key, B, N, h, w):
    C = sum(GAUSSIAN_CHANNELS)
    k1, k2 = jax.random.split(key)
    local_gaussian_params = jax.random.normal(k1, (B, N, C, h, w), dtype=jnp.float32)
    # cameras: 12 entries of c2w[:3, :4] + [fx, fy, cx, cy, H, W]
    c2w_part = jax.random.normal(k2, (B, N, 12), dtype=jnp.float32) * 0.5
    fx = jnp.full((B, N, 1), 70.0, jnp.float32)
    fy = jnp.full((B, N, 1), 72.0, jnp.float32)
    cx = jnp.full((B, N, 1), 32.0, jnp.float32)
    cy = jnp.full((B, N, 1), 33.0, jnp.float32)
    Hc = jnp.full((B, N, 1), 64.0, jnp.float32)
    Wc = jnp.full((B, N, 1), 64.0, jnp.float32)
    cameras = jnp.concatenate([c2w_part, fx, fy, cx, cy, Hc, Wc], axis=-1)  # (B, N, 18)
    return local_gaussian_params, cameras


if __name__ == "__main__":
    key = jax.random.PRNGKey(0)

    configs = [
        # (B, N, h, w, rows_per_tile)
        (2, 2, 32, 64, 8),      # multi-tile grid, power-of-two width
        (1, 2, 8, 16, 512),     # single full-extent tile
        (1, 2, 24, 48, 8),      # non-power-of-two width, multi-tile (+pad path)
        (1, 1, 24, 48, 512),    # non-power-of-two width, single 9-row tile
    ]
    for cfg_i, (B, N, h, w, rows_per_tile) in enumerate(configs):
        params, cameras = _make_inputs(jax.random.fold_in(key, cfg_i), B, N, h, w)
        outs = jax.block_until_ready(
            gaussian_converter(params, cameras, rows_per_tile=rows_per_tile))
        refs = gaussian_converter_ref(params, cameras)
        for o, r in zip(outs, refs):
            assert o.shape == r.shape, (o.shape, r.shape)
            np.testing.assert_allclose(np.asarray(o), np.asarray(r),
                                       rtol=1e-4, atol=1e-4)

    # bf16-input path (halves input HBM traffic; kernel math stays f32)
    params, cameras = _make_inputs(jax.random.fold_in(key, 100), 2, 2, 32, 64)
    params_bf16 = params.astype(jnp.bfloat16)
    outs = jax.block_until_ready(
        gaussian_converter(params_bf16, cameras, rows_per_tile=8))
    refs = gaussian_converter_ref(params_bf16.astype(jnp.float32), cameras)
    for o, r in zip(outs, refs):
        assert o.shape == r.shape, (o.shape, r.shape)
        np.testing.assert_allclose(np.asarray(o), np.asarray(r),
                                   rtol=1e-3, atol=1e-3)

    print("KERNEL_OK")
</pallas_src>

<mosaic_0001>
module attributes {stable_mosaic.version = 11 : i64} {
  func.func @_gaussian_kernel(%arg0: i32, %arg1: i32, %arg2: memref<64xf32, #tpu.memory_space<smem>>, %arg3: memref<1x14x8x128xf32, #tpu.memory_space<vmem>>, %arg4: memref<1x14x8x128xf32, #tpu.memory_space<vmem>>) attributes {dimension_semantics = [#tpu.dimension_semantics<parallel>, #tpu.dimension_semantics<parallel>], iteration_bounds = array<i64: 2, 4>, scalar_prefetch = 0 : i64, scratch_operands = 0 : i64, tpu.core_type = #tpu.core_type<tc>, window_params = [{transform_indices = @transform_0, window_bounds = array<i64: 64>}, {transform_indices = @transform_1, window_bounds = array<i64: 1, 14, 8, 128>}, {transform_indices = @transform_2, window_bounds = array<i64: 1, 14, 8, 128>}]} {
    %c16_i32 = arith.constant 16 : i32
    %0 = arith.muli %arg1, %c16_i32 : i32
    %c0_i32 = arith.constant 0 : i32
    %1 = arith.addi %0, %c0_i32 : i32
    %2 = arith.index_cast %1 : i32 to index
    %3 = memref.load %arg2[%2] : memref<64xf32, #tpu.memory_space<smem>>
    %c1_i32 = arith.constant 1 : i32
    %4 = arith.addi %0, %c1_i32 : i32
    %5 = arith.index_cast %4 : i32 to index
    %6 = memref.load %arg2[%5] : memref<64xf32, #tpu.memory_space<smem>>
    %c2_i32 = arith.constant 2 : i32
    %7 = arith.addi %0, %c2_i32 : i32
    %8 = arith.index_cast %7 : i32 to index
    %9 = memref.load %arg2[%8] : memref<64xf32, #tpu.memory_space<smem>>
    %c3_i32 = arith.constant 3 : i32
    %10 = arith.addi %0, %c3_i32 : i32
    %11 = arith.index_cast %10 : i32 to index
    %12 = memref.load %arg2[%11] : memref<64xf32, #tpu.memory_space<smem>>
    %c4_i32 = arith.constant 4 : i32
    %13 = arith.addi %0, %c4_i32 : i32
    %14 = arith.index_cast %13 : i32 to index
    %15 = memref.load %arg2[%14] : memref<64xf32, #tpu.memory_space<smem>>
    %c5_i32 = arith.constant 5 : i32
    %16 = arith.addi %0, %c5_i32 : i32
    %17 = arith.index_cast %16 : i32 to index
    %18 = memref.load %arg2[%17] : memref<64xf32, #tpu.memory_space<smem>>
    %c6_i32 = arith.constant 6 : i32
    %19 = arith.addi %0, %c6_i32 : i32
    %20 = arith.index_cast %19 : i32 to index
    %21 = memref.load %arg2[%20] : memref<64xf32, #tpu.memory_space<smem>>
    %c7_i32 = arith.constant 7 : i32
    %22 = arith.addi %0, %c7_i32 : i32
    %23 = arith.index_cast %22 : i32 to index
    %24 = memref.load %arg2[%23] : memref<64xf32, #tpu.memory_space<smem>>
    %c8_i32 = arith.constant 8 : i32
    %25 = arith.addi %0, %c8_i32 : i32
    %26 = arith.index_cast %25 : i32 to index
    %27 = memref.load %arg2[%26] : memref<64xf32, #tpu.memory_space<smem>>
    %c9_i32 = arith.constant 9 : i32
    %28 = arith.addi %0, %c9_i32 : i32
    %29 = arith.index_cast %28 : i32 to index
    %30 = memref.load %arg2[%29] : memref<64xf32, #tpu.memory_space<smem>>
    %c10_i32 = arith.constant 10 : i32
    %31 = arith.addi %0, %c10_i32 : i32
    %32 = arith.index_cast %31 : i32 to index
    %33 = memref.load %arg2[%32] : memref<64xf32, #tpu.memory_space<smem>>
    %c11_i32 = arith.constant 11 : i32
    %34 = arith.addi %0, %c11_i32 : i32
    %35 = arith.index_cast %34 : i32 to index
    %36 = memref.load %arg2[%35] : memref<64xf32, #tpu.memory_space<smem>>
    %c12_i32 = arith.constant 12 : i32
    %37 = arith.addi %0, %c12_i32 : i32
    %38 = arith.index_cast %37 : i32 to index
    %39 = memref.load %arg2[%38] : memref<64xf32, #tpu.memory_space<smem>>
    %c13_i32 = arith.constant 13 : i32
    %40 = arith.addi %0, %c13_i32 : i32
    %41 = arith.index_cast %40 : i32 to index
    %42 = memref.load %arg2[%41] : memref<64xf32, #tpu.memory_space<smem>>
    %c14_i32 = arith.constant 14 : i32
    %43 = arith.addi %0, %c14_i32 : i32
    %44 = arith.index_cast %43 : i32 to index
    %45 = memref.load %arg2[%44] : memref<64xf32, #tpu.memory_space<smem>>
    %c15_i32 = arith.constant 15 : i32
    %46 = arith.addi %0, %c15_i32 : i32
    %47 = arith.index_cast %46 : i32 to index
    %48 = memref.load %arg2[%47] : memref<64xf32, #tpu.memory_space<smem>>
    %49 = tpu.iota {dimensions = array<i32: 0>} : vector<8x128xi32>
    %50 = tpu.iota {dimensions = array<i32: 1>} : vector<8x128xi32>
    %c8_i32_0 = arith.constant 8 : i32
    %51 = arith.muli %arg0, %c8_i32_0 : i32
    %52 = vector.broadcast %51 : i32 to vector<8x128xi32>
    %53 = arith.addi %52, %49 : vector<8x128xi32>
    %c128_i32 = arith.constant 128 : i32
    %54 = vector.broadcast %c128_i32 : i32 to vector<8x128xi32>
    %55 = arith.muli %53, %54 : vector<8x128xi32>
    %56 = arith.addi %55, %50 : vector<8x128xi32>
    %c6_i32_1 = arith.constant 6 : i32
    %57 = vector.broadcast %c6_i32_1 : i32 to vector<8x128xi32>
    %58 = arith.shrsi %56, %57 : vector<8x128xi32>
    %c63_i32 = arith.constant 63 : i32
    %59 = vector.broadcast %c63_i32 : i32 to vector<8x128xi32>
    %60 = arith.andi %56, %59 : vector<8x128xi32>
    %61 = arith.sitofp %60 : vector<8x128xi32> to vector<8x128xf32>
    %cst = arith.constant 5.000000e-01 : f32
    %62 = vector.broadcast %cst : f32 to vector<8x128xf32>
    %63 = arith.addf %61, %62 : vector<8x128xf32>
    %64 = arith.sitofp %58 : vector<8x128xi32> to vector<8x128xf32>
    %cst_2 = arith.constant 5.000000e-01 : f32
    %65 = vector.broadcast %cst_2 : f32 to vector<8x128xf32>
    %66 = arith.addf %64, %65 : vector<8x128xf32>
    %67 = vector.broadcast %3 : f32 to vector<8x128xf32>
    %68 = arith.mulf %63, %67 : vector<8x128xf32>
    %c0 = arith.constant 0 : index
    %c3 = arith.constant 3 : index
    %c0_3 = arith.constant 0 : index
    %c0_4 = arith.constant 0 : index
    %69 = vector.load %arg3[%c0, %c3, %c0_3, %c0_4] : memref<1x14x8x128xf32, #tpu.memory_space<vmem>>, vector<1x1x8x128xf32>
    %70 = vector.shape_cast %69 : vector<1x1x8x128xf32> to vector<8x128xf32>
    %cst_5 = arith.constant 0.199999988 : f32
    %71 = vector.broadcast %cst_5 : f32 to vector<8x128xf32>
    %72 = arith.mulf %70, %71 : vector<8x128xf32>
    %73 = arith.addf %68, %72 : vector<8x128xf32>
    %74 = vector.broadcast %6 : f32 to vector<8x128xf32>
    %75 = arith.mulf %66, %74 : vector<8x128xf32>
    %c0_6 = arith.constant 0 : index
    %c4 = arith.constant 4 : index
    %c0_7 = arith.constant 0 : index
    %c0_8 = arith.constant 0 : index
    %76 = vector.load %arg3[%c0_6, %c4, %c0_7, %c0_8] : memref<1x14x8x128xf32, #tpu.memory_space<vmem>>, vector<1x1x8x128xf32>
    %77 = vector.shape_cast %76 : vector<1x1x8x128xf32> to vector<8x128xf32>
    %cst_9 = arith.constant 0.199999988 : f32
    %78 = vector.broadcast %cst_9 : f32 to vector<8x128xf32>
    %79 = arith.mulf %77, %78 : vector<8x128xf32>
    %80 = arith.addf %75, %79 : vector<8x128xf32>
    %cst_10 = arith.constant 1.000000e+00 : f32
    %81 = vector.broadcast %cst_10 : f32 to vector<8x128xf32>
    %82 = arith.subf %73, %81 : vector<8x128xf32>
    %83 = vector.broadcast %9 : f32 to vector<8x128xf32>
    %84 = arith.mulf %82, %83 : vector<8x128xf32>
    %cst_11 = arith.constant 1.000000e+00 : f32
    %85 = vector.broadcast %cst_11 : f32 to vector<8x128xf32>
    %86 = arith.subf %85, %80 : vector<8x128xf32>
    %87 = vector.broadcast %12 : f32 to vector<8x128xf32>
    %88 = arith.mulf %86, %87 : vector<8x128xf32>
    %89 = vector.broadcast %24 : f32 to vector<8x128xf32>
    %90 = arith.mulf %89, %84 : vector<8x128xf32>
    %91 = vector.broadcast %27 : f32 to vector<8x128xf32>
    %92 = arith.mulf %91, %88 : vector<8x128xf32>
    %93 = arith.addf %90, %92 : vector<8x128xf32>
    %94 = vector.broadcast %30 : f32 to vector<8x128xf32>
    %95 = arith.subf %93, %94 : vector<8x128xf32>
    %96 = vector.broadcast %33 : f32 to vector<8x128xf32>
    %97 = arith.mulf %96, %84 : vector<8x128xf32>
    %98 = vector.broadcast %36 : f32 to vector<8x128xf32>
    %99 = arith.mulf %98, %88 : vector<8x128xf32>
    %100 = arith.addf %97, %99 : vector<8x128xf32>
    %101 = vector.broadcast %39 : f32 to vector<8x128xf32>
    %102 = arith.subf %100, %101 : vector<8x128xf32>
    %103 = vector.broadcast %42 : f32 to vector<8x128xf32>
    %104 = arith.mulf %103, %84 : vector<8x128xf32>
    %105 = vector.broadcast %45 : f32 to vector<8x128xf32>
    %106 = arith.mulf %105, %88 : vector<8x128xf32>
    %107 = arith.addf %104, %106 : vector<8x128xf32>
    %108 = vector.broadcast %48 : f32 to vector<8x128xf32>
    %109 = arith.subf %107, %108 : vector<8x128xf32>
    %110 = arith.mulf %95, %95 : vector<8x128xf32>
    %111 = arith.mulf %102, %102 : vector<8x128xf32>
    %112 = arith.addf %110, %111 : vector<8x128xf32>
    %113 = arith.mulf %109, %109 : vector<8x128xf32>
    %114 = arith.addf %112, %113 : vector<8x128xf32>
    %cst_12 = arith.constant 1.000000e-24 : f32
    %115 = vector.broadcast %cst_12 : f32 to vector<8x128xf32>
    %116 = arith.maximumf %114, %115 : vector<8x128xf32>
    %117 = math.rsqrt %116 : vector<8x128xf32>
    %c0_13 = arith.constant 0 : index
    %c5 = arith.constant 5 : index
    %c0_14 = arith.constant 0 : index
    %c0_15 = arith.constant 0 : index
    %118 = vector.load %arg3[%c0_13, %c5, %c0_14, %c0_15] : memref<1x14x8x128xf32, #tpu.memory_space<vmem>>, vector<1x1x8x128xf32>
    %119 = vector.shape_cast %118 : vector<1x1x8x128xf32> to vector<8x128xf32>
    %cst_16 = arith.constant 1.000000e+00 : f32
    %120 = vector.broadcast %cst_16 : f32 to vector<8x128xf32>
    %121 = arith.mulf %119, %120 : vector<8x128xf32>
    %cst_17 = arith.constant 1.850000e+00 : f32
    %122 = vector.broadcast %cst_17 : f32 to vector<8x128xf32>
    %123 = arith.addf %121, %122 : vector<8x128xf32>
    %124 = arith.mulf %95, %117 : vector<8x128xf32>
    %125 = arith.mulf %123, %124 : vector<8x128xf32>
    %126 = vector.broadcast %15 : f32 to vector<8x128xf32>
    %127 = arith.addf %126, %125 : vector<8x128xf32>
    %c0_18 = arith.constant 0 : index
    %c0_19 = arith.constant 0 : index
    %c0_20 = arith.constant 0 : index
    %c0_21 = arith.constant 0 : index
    %128 = vector.load %arg4[%c0_18, %c0_19, %c0_20, %c0_21] : memref<1x14x8x128xf32, #tpu.memory_space<vmem>>, vector<1x1x8x128xf32>
    %129 = vector.shape_cast %128 : vector<1x1x8x128xf32> to vector<8x128xf32>
    %130 = vector.shape_cast %127 : vector<8x128xf32> to vector<1x1x8x128xf32>
    tpu.vector_store %arg4[%c0_18, %c0_19, %c0_20, %c0_21], %130 {strides = array<i32>} : memref<1x14x8x128xf32, #tpu.memory_space<vmem>>, vector<1x1x8x128xf32>,
    %131 = arith.mulf %102, %117 : vector<8x128xf32>
    %132 = arith.mulf %123, %131 : vector<8x128xf32>
    %133 = vector.broadcast %18 : f32 to vector<8x128xf32>
    %134 = arith.addf %133, %132 : vector<8x128xf32>
    %c0_22 = arith.constant 0 : index
    %c1 = arith.constant 1 : index
    %c0_23 = arith.constant 0 : index
    %c0_24 = arith.constant 0 : index
    %135 = vector.load %arg4[%c0_22, %c1, %c0_23, %c0_24] : memref<1x14x8x128xf32, #tpu.memory_space<vmem>>, vector<1x1x8x128xf32>
    %136 = vector.shape_cast %135 : vector<1x1x8x128xf32> to vector<8x128xf32>
    %137 = vector.shape_cast %134 : vector<8x128xf32> to vector<1x1x8x128xf32>
    tpu.vector_store %arg4[%c0_22, %c1, %c0_23, %c0_24], %137 {strides = array<i32>} : memref<1x14x8x128xf32, #tpu.memory_space<vmem>>, vector<1x1x8x128xf32>,
    %138 = arith.mulf %109, %117 : vector<8x128xf32>
    %139 = arith.mulf %123, %138 : vector<8x128xf32>
    %140 = vector.broadcast %21 : f32 to vector<8x128xf32>
    %141 = arith.addf %140, %139 : vector<8x128xf32>
    %c0_25 = arith.constant 0 : index
    %c2 = arith.constant 2 : index
    %c0_26 = arith.constant 0 : index
    %c0_27 = arith.constant 0 : index
    %142 = vector.load %arg4[%c0_25, %c2, %c0_26, %c0_27] : memref<1x14x8x128xf32, #tpu.memory_space<vmem>>, vector<1x1x8x128xf32>
    %143 = vector.shape_cast %142 : vector<1x1x8x128xf32> to vector<8x128xf32>
    %144 = vector.shape_cast %141 : vector<8x128xf32> to vector<1x1x8x128xf32>
    tpu.vector_store %arg4[%c0_25, %c2, %c0_26, %c0_27], %144 {strides = array<i32>} : memref<1x14x8x128xf32, #tpu.memory_space<vmem>>, vector<1x1x8x128xf32>,
    %c0_28 = arith.constant 0 : index
    %c0_29 = arith.constant 0 : index
    %c0_30 = arith.constant 0 : index
    %c0_31 = arith.constant 0 : index
    %145 = vector.load %arg3[%c0_28, %c0_29, %c0_30, %c0_31] : memref<1x14x8x128xf32, #tpu.memory_space<vmem>>, vector<1x3x8x128xf32>
    %146 = vector.shape_cast %145 : vector<1x3x8x128xf32> to vector<3x8x128xf32>
    %cst_32 = arith.constant 0.354490757 : f32
    %147 = vector.broadcast %cst_32 : f32 to vector<3x8x128xf32>
    %148 = arith.mulf %146, %147 : vector<3x8x128xf32>
    %c0_33 = arith.constant 0 : index
    %c3_34 = arith.constant 3 : index
    %c0_35 = arith.constant 0 : index
    %c0_36 = arith.constant 0 : index
    %149 = vector.load %arg4[%c0_33, %c3_34, %c0_35, %c0_36] : memref<1x14x8x128xf32, #tpu.memory_space<vmem>>, vector<1x3x8x128xf32>
    %150 = vector.shape_cast %149 : vector<1x3x8x128xf32> to vector<3x8x128xf32>
    %151 = vector.shape_cast %148 : vector<3x8x128xf32> to vector<1x3x8x128xf32>
    tpu.vector_store %arg4[%c0_33, %c3_34, %c0_35, %c0_36], %151 {strides = array<i32>} : memref<1x14x8x128xf32, #tpu.memory_space<vmem>>, vector<1x3x8x128xf32>,
    %c0_37 = arith.constant 0 : index
    %c6 = arith.constant 6 : index
    %c0_38 = arith.constant 0 : index
    %c0_39 = arith.constant 0 : index
    %152 = vector.load %arg3[%c0_37, %c6, %c0_38, %c0_39] : memref<1x14x8x128xf32, #tpu.memory_space<vmem>>, vector<1x1x8x128xf32>
    %153 = vector.shape_cast %152 : vector<1x1x8x128xf32> to vector<8x128xf32>
    %cst_40 = arith.constant 1.000000e+00 : f32
    %154 = vector.broadcast %cst_40 : f32 to vector<8x128xf32>
    %155 = arith.mulf %153, %154 : vector<8x128xf32>
    %cst_41 = arith.constant -4.595120e+00 : f32
    %156 = vector.broadcast %cst_41 : f32 to vector<8x128xf32>
    %157 = arith.addf %155, %156 : vector<8x128xf32>
    %158 = arith.negf %157 : vector<8x128xf32>
    %159 = math.exp %158 : vector<8x128xf32>
    %cst_42 = arith.constant 1.000000e+00 : f32
    %160 = vector.broadcast %cst_42 : f32 to vector<8x128xf32>
    %161 = arith.addf %160, %159 : vector<8x128xf32>
    %162 = arith.divf %160, %161 : vector<8x128xf32>
    %c0_43 = arith.constant 0 : index
    %c6_44 = arith.constant 6 : index
    %c0_45 = arith.constant 0 : index
    %c0_46 = arith.constant 0 : index
    %163 = vector.load %arg4[%c0_43, %c6_44, %c0_45, %c0_46] : memref<1x14x8x128xf32, #tpu.memory_space<vmem>>, vector<1x1x8x128xf32>
    %164 = vector.shape_cast %163 : vector<1x1x8x128xf32> to vector<8x128xf32>
    %165 = vector.shape_cast %162 : vector<8x128xf32> to vector<1x1x8x128xf32>
    tpu.vector_store %arg4[%c0_43, %c6_44, %c0_45, %c0_46], %165 {strides = array<i32>} : memref<1x14x8x128xf32, #tpu.memory_space<vmem>>, vector<1x1x8x128xf32>,
    %c0_47 = arith.constant 0 : index
    %c7 = arith.constant 7 : index
    %c0_48 = arith.constant 0 : index
    %c0_49 = arith.constant 0 : index
    %166 = vector.load %arg3[%c0_47, %c7, %c0_48, %c0_49] : memref<1x14x8x128xf32, #tpu.memory_space<vmem>>, vector<1x3x8x128xf32>
    %167 = vector.shape_cast %166 : vector<1x3x8x128xf32> to vector<3x8x128xf32>
    %cst_50 = arith.constant 0.099999994 : f32
    %168 = vector.broadcast %cst_50 : f32 to vector<3x8x128xf32>
    %169 = arith.mulf %167, %168 : vector<3x8x128xf32>
    %cst_51 = arith.constant -4.60517025 : f32
    %170 = vector.broadcast %cst_51 : f32 to vector<3x8x128xf32>
    %171 = arith.addf %169, %170 : vector<3x8x128xf32>
    %172 = math.exp %171 : vector<3x8x128xf32>
    %c0_52 = arith.constant 0 : index
    %c7_53 = arith.constant 7 : index
    %c0_54 = arith.constant 0 : index
    %c0_55 = arith.constant 0 : index
    %173 = vector.load %arg4[%c0_52, %c7_53, %c0_54, %c0_55] : memref<1x14x8x128xf32, #tpu.memory_space<vmem>>, vector<1x3x8x128xf32>
    %174 = vector.shape_cast %173 : vector<1x3x8x128xf32> to vector<3x8x128xf32>
    %175 = vector.shape_cast %172 : vector<3x8x128xf32> to vector<1x3x8x128xf32>
    tpu.vector_store %arg4[%c0_52, %c7_53, %c0_54, %c0_55], %175 {strides = array<i32>} : memref<1x14x8x128xf32, #tpu.memory_space<vmem>>, vector<1x3x8x128xf32>,
    %c0_56 = arith.constant 0 : index
    %c10 = arith.constant 10 : index
    %c0_57 = arith.constant 0 : index
    %c0_58 = arith.constant 0 : index
    %176 = vector.load %arg3[%c0_56, %c10, %c0_57, %c0_58] : memref<1x14x8x128xf32, #tpu.memory_space<vmem>>, vector<1x1x8x128xf32>
    %177 = vector.shape_cast %176 : vector<1x1x8x128xf32> to vector<8x128xf32>
    %cst_59 = arith.constant 0.099999994 : f32
    %178 = vector.broadcast %cst_59 : f32 to vector<8x128xf32>
    %179 = arith.mulf %177, %178 : vector<8x128xf32>
    %cst_60 = arith.constant 1.000000e+00 : f32
    %180 = vector.broadcast %cst_60 : f32 to vector<8x128xf32>
    %181 = arith.addf %179, %180 : vector<8x128xf32>
    %c0_61 = arith.constant 0 : index
    %c11 = arith.constant 11 : index
    %c0_62 = arith.constant 0 : index
    %c0_63 = arith.constant 0 : index
    %182 = vector.load %arg3[%c0_61, %c11, %c0_62, %c0_63] : memref<1x14x8x128xf32, #tpu.memory_space<vmem>>, vector<1x1x8x128xf32>
    %183 = vector.shape_cast %182 : vector<1x1x8x128xf32> to vector<8x128xf32>
    %cst_64 = arith.constant 0.099999994 : f32
    %184 = vector.broadcast %cst_64 : f32 to vector<8x128xf32>
    %185 = arith.mulf %183, %184 : vector<8x128xf32>
    %c0_65 = arith.constant 0 : index
    %c12 = arith.constant 12 : index
    %c0_66 = arith.constant 0 : index
    %c0_67 = arith.constant 0 : index
    %186 = vector.load %arg3[%c0_65, %c12, %c0_66, %c0_67] : memref<1x14x8x128xf32, #tpu.memory_space<vmem>>, vector<1x1x8x128xf32>
    %187 = vector.shape_cast %186 : vector<1x1x8x128xf32> to vector<8x128xf32>
    %cst_68 = arith.constant 0.099999994 : f32
    %188 = vector.broadcast %cst_68 : f32 to vector<8x128xf32>
    %189 = arith.mulf %187, %188 : vector<8x128xf32>
    %c0_69 = arith.constant 0 : index
    %c13 = arith.constant 13 : index
    %c0_70 = arith.constant 0 : index
    %c0_71 = arith.constant 0 : index
    %190 = vector.load %arg3[%c0_69, %c13, %c0_70, %c0_71] : memref<1x14x8x128xf32, #tpu.memory_space<vmem>>, vector<1x1x8x128xf32>
    %191 = vector.shape_cast %190 : vector<1x1x8x128xf32> to vector<8x128xf32>
    %cst_72 = arith.constant 0.099999994 : f32
    %192 = vector.broadcast %cst_72 : f32 to vector<8x128xf32>
    %193 = arith.mulf %191, %192 : vector<8x128xf32>
    %194 = arith.mulf %181, %181 : vector<8x128xf32>
    %195 = arith.mulf %185, %185 : vector<8x128xf32>
    %196 = arith.addf %194, %195 : vector<8x128xf32>
    %197 = arith.mulf %189, %189 : vector<8x128xf32>
    %198 = arith.addf %196, %197 : vector<8x128xf32>
    %199 = arith.mulf %193, %193 : vector<8x128xf32>
    %200 = arith.addf %198, %199 : vector<8x128xf32>
    %cst_73 = arith.constant 1.000000e-24 : f32
    %201 = vector.broadcast %cst_73 : f32 to vector<8x128xf32>
    %202 = arith.maximumf %200, %201 : vector<8x128xf32>
    %203 = math.rsqrt %202 : vector<8x128xf32>
    %204 = arith.mulf %181, %203 : vector<8x128xf32>
    %c0_74 = arith.constant 0 : index
    %c10_75 = arith.constant 10 : index
    %c0_76 = arith.constant 0 : index
    %c0_77 = arith.constant 0 : index
    %205 = vector.load %arg4[%c0_74, %c10_75, %c0_76, %c0_77] : memref<1x14x8x128xf32, #tpu.memory_space<vmem>>, vector<1x1x8x128xf32>
    %206 = vector.shape_cast %205 : vector<1x1x8x128xf32> to vector<8x128xf32>
    %207 = vector.shape_cast %204 : vector<8x128xf32> to vector<1x1x8x128xf32>
    tpu.vector_store %arg4[%c0_74, %c10_75, %c0_76, %c0_77], %207 {strides = array<i32>} : memref<1x14x8x128xf32, #tpu.memory_space<vmem>>, vector<1x1x8x128xf32>,
    %208 = arith.mulf %185, %203 : vector<8x128xf32>
    %c0_78 = arith.constant 0 : index
    %c11_79 = arith.constant 11 : index
    %c0_80 = arith.constant 0 : index
    %c0_81 = arith.constant 0 : index
    %209 = vector.load %arg4[%c0_78, %c11_79, %c0_80, %c0_81] : memref<1x14x8x128xf32, #tpu.memory_space<vmem>>, vector<1x1x8x128xf32>
    %210 = vector.shape_cast %209 : vector<1x1x8x128xf32> to vector<8x128xf32>
    %211 = vector.shape_cast %208 : vector<8x128xf32> to vector<1x1x8x128xf32>
    tpu.vector_store %arg4[%c0_78, %c11_79, %c0_80, %c0_81], %211 {strides = array<i32>} : memref<1x14x8x128xf32, #tpu.memory_space<vmem>>, vector<1x1x8x128xf32>,
    %212 = arith.mulf %189, %203 : vector<8x128xf32>
    %c0_82 = arith.constant 0 : index
    %c12_83 = arith.constant 12 : index
    %c0_84 = arith.constant 0 : index
    %c0_85 = arith.constant 0 : index
    %213 = vector.load %arg4[%c0_82, %c12_83, %c0_84, %c0_85] : memref<1x14x8x128xf32, #tpu.memory_space<vmem>>, vector<1x1x8x128xf32>
    %214 = vector.shape_cast %213 : vector<1x1x8x128xf32> to vector<8x128xf32>
    %215 = vector.shape_cast %212 : vector<8x128xf32> to vector<1x1x8x128xf32>
    tpu.vector_store %arg4[%c0_82, %c12_83, %c0_84, %c0_85], %215 {strides = array<i32>} : memref<1x14x8x128xf32, #tpu.memory_space<vmem>>, vector<1x1x8x128xf32>,
    %216 = arith.mulf %193, %203 : vector<8x128xf32>
    %c0_86 = arith.constant 0 : index
    %c13_87 = arith.constant 13 : index
    %c0_88 = arith.constant 0 : index
    %c0_89 = arith.constant 0 : index
    %217 = vector.load %arg4[%c0_86, %c13_87, %c0_88, %c0_89] : memref<1x14x8x128xf32, #tpu.memory_space<vmem>>, vector<1x1x8x128xf32>
    %218 = vector.shape_cast %217 : vector<1x1x8x128xf32> to vector<8x128xf32>
    %219 = vector.shape_cast %216 : vector<8x128xf32> to vector<1x1x8x128xf32>
    tpu.vector_store %arg4[%c0_86, %c13_87, %c0_88, %c0_89], %219 {strides = array<i32>} : memref<1x14x8x128xf32, #tpu.memory_space<vmem>>, vector<1x1x8x128xf32>,
    return
  }
  func.func @transform_0(%arg0: i32, %arg1: i32) -> i32 {
    %c0_i32 = arith.constant 0 : i32
    %c0_i32_0 = arith.constant 0 : i32
    return %c0_i32 : i32
  }
  func.func @transform_1(%arg0: i32, %arg1: i32) -> (i32, i32, i32, i32) {
    %c0_i32 = arith.constant 0 : i32
    %c0_i32_0 = arith.constant 0 : i32
    %c0_i32_1 = arith.constant 0 : i32
    return %arg1, %c0_i32, %arg0, %c0_i32_0 : i32, i32, i32, i32
  }
  func.func @transform_2(%arg0: i32, %arg1: i32) -> (i32, i32, i32, i32) {
    %c0_i32 = arith.constant 0 : i32
    %c0_i32_0 = arith.constant 0 : i32
    %c0_i32_1 = arith.constant 0 : i32
    return %arg1, %c0_i32, %arg0, %c0_i32_0 : i32, i32, i32, i32
  }
}

</mosaic_0001>

<llo_original>
// kernel: tpu_custom_call.1
$region0: #{tpu_custom_call.1}
  #allocation0 [shape = 'u32[]', space=smem, size = 0x4, offset = 0x4, fixed_abs, tag = 'smem constant byte address 0x4 - core index']
  #allocation1 [shape = 'u32[144,128]{1,0:T(1,128)}', space=vmem, size = 0x12000, scoped, tag = 'internal scratch']
  %s0 = inlined_call_operand.hbm [shape: f32[64], index: 0, kind: input, shape index: {}]
  %s1 = inlined_call_operand.hbm [shape: f32[4,14,16,128], index: 1, kind: input, shape index: {}]
  %s2 = inlined_call_operand.hbm [shape: f32[4,14,16,128], index: 2, kind: output, shape index: {}]
  %s3 = sld [smem:[#allocation0]]
  $region49: #{tpu_custom_call.1} parent=0
    _
  %s5 = ssub.s32 1, %s3
  %s6 = scalar_select 0, %s5, %s3
  $region1: #{tpu_custom_call.1} parent=0
    #allocation2 [shape = 'u8[512]{0}', space=smem, size = 0x200, scoped, tag = 'input window, operand 0, single buffered']
    #allocation3 [shape = 's32[2]{0}', space=sflag, size = 0x8, scoped, tag = 'scoped memory for tpu_custom_call.1']
    #allocation4 [shape = 's32[2]{0}', space=sflag, size = 0x8, scoped, tag = 'scoped memory for tpu_custom_call.1']
    #allocation5 [shape = 's32[2]{0}', space=sflag, size = 0x8, scoped, tag = 'scoped memory for tpu_custom_call.1']
    #allocation6 [shape = 'u8[114688]{0}', space=vmem, size = 0x1c000, scoped, tag = 'input window, operand 1']
    #allocation7 [shape = 'u8[114688]{0}', space=vmem, size = 0x1c000, scoped, tag = 'output window, operand 0']
    %7 = vsyncpa [#allocation5], 0
    %8 = vsyncpa [#allocation3], 0
    %s9 = scalar_lea.sflag [#allocation3], 1
    %10 = vsyncpa %s9, 0
    %11 = vsyncpa [#allocation4], 0
    %s12 = scalar_lea.sflag [#allocation4], 1
    %13 = vsyncpa %s12, 0
    loop: start=0, step=1, limit=10
    $region2: #{tpu_custom_call.1} parent=1 // loop_pre_header
      _
    $region3: #{tpu_custom_call.1} parent=1 // loop_header
      %s15 = sphi 0, %s19
      %p16 = scmp.ge.s32.totalorder %s15, 10
      %s22 = sphi 0, %s34
      %s23 = sphi 0, %s30
      %s24 = sphi 0, %s22
      %s25 = sphi 0, %s23
      %s26 = sphi 0, %s24
      %s27 = sphi 0, %s25
      %s35 = sphi 0, %s35
      %s37 = sphi 0, %s35
      %s38 = sphi 0, %s37
      %s52 = sphi 0, %s38
      %s60 = sphi 0, %s62
      %s63 = sphi 0, %s60
      %s64 = sphi 0, %s63
      %s80 = sphi 0, %s64
      %s88 = sphi 0, %s90
      %s91 = sphi 0, %s88
      %s92 = sphi 0, %s91
      %s108 = sphi 0, %s92
    $region4: #{tpu_custom_call.1} parent=1 // loop_header_branch
      %18 = sbr.rel (%p16) target = $region8
    $region5: #{tpu_custom_call.1} parent=1 // loop_body
      %s20 = ssub.s32 %s15, 1
      %s21 = ssub.s32 %s15, 2
      %s28 = sadd.s32 1, %s23
      %p29 = scmp.ge.s32.totalorder %s28, 4
      %s30 = scalar_select %p29, 0, %s28
      %s31 = sadd.s32 1, %s22
      %s32 = scalar_select %p29, %s31, %s22
      %p33 = scmp.ge.s32.totalorder %s32, 2
      %s34 = scalar_select %p33, 0, %s32
      %s36 = sadd.s32 %s35, 1
      %p39 = scmp.eq.s32.totalorder %s15, 7
      %p40 = scmp.ne.s32.totalorder %s35, %s37
      %p41 = scmp.eq.s32.totalorder %s15, 0
      %p42 = por %p40, %p41
      %p43 = scmp.ne.s32.totalorder %s35, %s37
      %p44 = scmp.eq.s32.totalorder %s20, 7
      %p45 = por %p43, %p44
      %p46 = scmp.ne.s32.totalorder %s37, %s38
      %p47 = scmp.eq.s32.totalorder %s20, 0
      %p48 = por %p46, %p47
      %p49 = scmp.ne.s32.totalorder %s37, %s38
      %p50 = scmp.eq.s32.totalorder %s21, 7
      %p51 = por %p49, %p50
      %p53 = scmp.ne.s32.totalorder %s38, %s52
      %p54 = scmp.eq.s32.totalorder %s21, 0
      %p55 = por %p53, %p54
      %s56 = ssub.s32 %s23, %s30
      %s57 = ssub.s32 %s22, %s34
      %s58 = sor.u32 %s56, %s57
      %p59 = scmp.eq.s32.totalorder %s58, 0
      %s61 = sadd.s32 %s60, 1
      %s62 = scalar_select %p59, %s60, %s61
      %p65 = pneg %p59
      %p66 = scmp.eq.s32.totalorder %s15, 7
      %p67 = por %p65, %p66
      %p68 = scmp.ne.s32.totalorder %s60, %s63
      %p69 = scmp.eq.s32.totalorder %s15, 0
      %p70 = por %p68, %p69
      %p71 = scmp.ne.s32.totalorder %s60, %s63
      %p72 = scmp.eq.s32.totalorder %s20, 7
      %p73 = por %p71, %p72
      %p74 = scmp.ne.s32.totalorder %s63, %s64
      %p75 = scmp.eq.s32.totalorder %s20, 0
      %p76 = por %p74, %p75
      %p77 = scmp.ne.s32.totalorder %s63, %s64
      %p78 = scmp.eq.s32.totalorder %s21, 7
      %p79 = por %p77, %p78
      %p81 = scmp.ne.s32.totalorder %s64, %s80
      %p82 = scmp.eq.s32.totalorder %s21, 0
      %p83 = por %p81, %p82
      %s84 = ssub.s32 %s23, %s30
      %s85 = ssub.s32 %s22, %s34
      %s86 = sor.u32 %s84, %s85
      %p87 = scmp.eq.s32.totalorder %s86, 0
      %s89 = sadd.s32 %s88, 1
      %s90 = scalar_select %p87, %s88, %s89
      %p93 = pneg %p87
      %p94 = scmp.eq.s32.totalorder %s15, 7
      %p95 = por %p93, %p94
      %p96 = scmp.ne.s32.totalorder %s88, %s91
      %p97 = scmp.eq.s32.totalorder %s15, 0
      %p98 = por %p96, %p97
      %p99 = scmp.ne.s32.totalorder %s88, %s91
      %p100 = scmp.eq.s32.totalorder %s20, 7
      %p101 = por %p99, %p100
      %p102 = scmp.ne.s32.totalorder %s91, %s92
      %p103 = scmp.eq.s32.totalorder %s20, 0
      %p104 = por %p102, %p103
      %p105 = scmp.ne.s32.totalorder %s91, %s92
      %p106 = scmp.eq.s32.totalorder %s21, 7
      %p107 = por %p105, %p106
      %p109 = scmp.ne.s32.totalorder %s92, %s108
      %p110 = scmp.eq.s32.totalorder %s21, 0
      %p111 = por %p109, %p110
      %p112 = scmp.le.s32.totalorder 1, %s15
      %p113 = scmp.lt.s32.totalorder %s15, 9
      %p114 = pnand %p112, %p113
      %p115 = pneg %p114
      // Predicated region
      $region9: #{tpu_custom_call.1} parent=5 // pred_check
        _
      $region10: #{tpu_custom_call.1} parent=5 // pred_check_branch
        %117 = sbr.rel (%p114) target = $region12
      $region11: #{tpu_custom_call.1} parent=5 // pred_region
        %s118 = ssub.s32 %s15, 1
        // Predicated region
        $region13: #{tpu_custom_call.1} parent=11 // pred_check
          %p119 = pneg %p48
        $region14: #{tpu_custom_call.1} parent=11 // pred_check_branch
          %121 = sbr.rel (%p119) target = $region16
        $region15: #{tpu_custom_call.1} parent=11 // pred_region
          %s123 = ssub.s32 16, 16
          %124 = vsyncadd [#allocation5], %s123
          %127 = dma.hbm_to_smem %s0, 16, [#allocation2], [#allocation5]
        $region16: #{tpu_custom_call.1} parent=11 // pred_fallthru
          _
      $region12: #{tpu_custom_call.1} parent=5 // pred_fallthru
        _
      %p128 = scmp.lt.s32.totalorder %s15, 8
      // Predicated region
      $region17: #{tpu_custom_call.1} parent=5 // pred_check
        %p129 = pneg %p128
      $region18: #{tpu_custom_call.1} parent=5 // pred_check_branch
        %131 = sbr.rel (%p129) target = $region20
      $region19: #{tpu_custom_call.1} parent=5 // pred_region
        // Predicated region
        $region21: #{tpu_custom_call.1} parent=19 // pred_check
          %p132 = pneg %p70
        $region22: #{tpu_custom_call.1} parent=19 // pred_check_branch
          %134 = sbr.rel (%p132) target = $region24
        $region23: #{tpu_custom_call.1} parent=19 // pred_region
          %s135 = sand.u32 %s60, 1
          %s136 = scalar_lea.sflag [#allocation3], %s135
          %s137 = sand.u32 %s60, 1
          %s138 = smul.addr %s137, 112
          %s139 = scalar_lea.vmem [#allocation6], %s138
          %s141 = ssub.s32 1792, 1792
          %142 = vsyncadd %s136, %s141
          %s143 = smul.addr %s23, 28
          %s144 = sadd.s32 %s22, %s143
          %s145 = smul.addr %s144, 128
          %s146 = scalar_lea.hbm %s1, %s145
          %s147 = sshll.u32 %s139, 4
          %s148 = int_to_ptr.vmem [resolvable:$true] %s147
          %153 = dma.hbm_to_vmem [thread:$0]  %s146, 1792, %s148, %s136, 256, 128, 8
        $region24: #{tpu_custom_call.1} parent=19 // pred_fallthru
          _
      $region20: #{tpu_custom_call.1} parent=5 // pred_fallthru
        _
      %p154 = scmp.le.s32.totalorder 1, %s15
      %p155 = scmp.lt.s32.totalorder %s15, 9
      %p156 = pnand %p154, %p155
      %p157 = pneg %p156
      // Predicated region
      $region25: #{tpu_custom_call.1} parent=5 // pred_check
        _
      $region26: #{tpu_custom_call.1} parent=5 // pred_check_branch
        %159 = sbr.rel (%p156) target = $region28
      $region27: #{tpu_custom_call.1} parent=5 // pred_region
        %s160 = ssub.s32 %s15, 1
        // Predicated region
        $region29: #{tpu_custom_call.1} parent=27 // pred_check
          %p161 = pneg %p48
        $region30: #{tpu_custom_call.1} parent=27 // pred_check_branch
          %163 = sbr.rel (%p161) target = $region32
        $region31: #{tpu_custom_call.1} parent=27 // pred_region
          %164 = dma.done [#allocation5], 16
        $region32: #{tpu_custom_call.1} parent=27 // pred_fallthru
          _
        %s165 = sand.u32 %s63, 1
        %s166 = scalar_lea.sflag [#allocation3], %s165
        %s167 = sand.u32 %s63, 1
        %s168 = smul.addr %s167, 112
        %s169 = scalar_lea.vmem [#allocation6], %s168
        // Predicated region
        $region33: #{tpu_custom_call.1} parent=27 // pred_check
          %p170 = pneg %p76
        $region34: #{tpu_custom_call.1} parent=27 // pred_check_branch
          %172 = sbr.rel (%p170) target = $region36
        $region35: #{tpu_custom_call.1} parent=27 // pred_region
          %173 = dma.done %s166, 1792
        $region36: #{tpu_custom_call.1} parent=27 // pred_fallthru
          _
        %174 = sfence
        %p175 = pneg %p48
        %p176 = pneg %p45
        %s177 = sand.u32 %s63, 1
        %s178 = scalar_lea.sflag [#allocation3], %s177
        %s179 = sand.u32 %s63, 1
        %s180 = smul.addr %s179, 112
        %s181 = scalar_lea.vmem [#allocation6], %s180
        %p182 = pneg %p76
        %p183 = pneg %p73
        %p184 = pneg %p104
        %p185 = pneg %p101
        %s186 = sand.u32 %s91, 1
        %s187 = scalar_lea.sflag [#allocation4], %s186
        %s188 = sand.u32 %s91, 1
        %s189 = smul.addr %s188, 112
        %s190 = scalar_lea.vmem [#allocation7], %s189
        %s191 = smul.u32 %s25, 16
        %s192 = sld [smem:[#allocation2 + %s191]]
        %s193 = sadd.s32 %s191, 1
        %s194 = sld [smem:[#allocation2 + %s193]]
        %s195 = sadd.s32 %s191, 2
        %s196 = sld [smem:[#allocation2 + %s195]]
        %s197 = sadd.s32 %s191, 3
        %s198 = sld [smem:[#allocation2 + %s197]]
        %s199 = sadd.s32 %s191, 4
        %s200 = sld [smem:[#allocation2 + %s199]]
        %s201 = sadd.s32 %s191, 5
        %s202 = sld [smem:[#allocation2 + %s201]]
        %s203 = sadd.s32 %s191, 6
        %s204 = sld [smem:[#allocation2 + %s203]]
        %s205 = sadd.s32 %s191, 7
        %s206 = sld [smem:[#allocation2 + %s205]]
        %s207 = sadd.s32 %s191, 8
        %s208 = sld [smem:[#allocation2 + %s207]]
        %s209 = sadd.s32 %s191, 9
        %s210 = sld [smem:[#allocation2 + %s209]]
        %s211 = sadd.s32 %s191, 10
        %s212 = sld [smem:[#allocation2 + %s211]]
        %s213 = sadd.s32 %s191, 11
        %s214 = sld [smem:[#allocation2 + %s213]]
        %s215 = sadd.s32 %s191, 12
        %s216 = sld [smem:[#allocation2 + %s215]]
        %s217 = sadd.s32 %s191, 13
        %s218 = sld [smem:[#allocation2 + %s217]]
        %s219 = sadd.s32 %s191, 14
        %s220 = sld [smem:[#allocation2 + %s219]]
        %s221 = sadd.s32 %s191, 15
        %s222 = sld [smem:[#allocation2 + %s221]]
        %v223 = vlaneseq
        %v224 = vshrl.u32 %v223, 7
        %v225 = vlaneseq
        %v226 = vand.u32 %v225, 127
        %s227 = smul.u32 %s24, 8
        %v228 = vstv %s227
        %v229 = vadd.s32 %v228, %v224
        %v230 = vmul.u32 %v229, 128
        %v231 = vadd.s32 %v230, %v226
        %v232 = vshra.s32 %v231, 6
        %v233 = vand.u32 %v231, 63
        %v234 = vcvt.s32.f32 %v233
        %v235 = vadd.f32 %v234, 0.5
        %v236 = vcvt.s32.f32 %v232
        %v237 = vadd.f32 %v236, 0.5
        %v238 = vstv %s192
        %v239 = vmul.f32 %v235, %v238
        %s240 = scalar_lea.vmem %s169, 24 [#allocation6]
        %v241 = vld [vmem:[%s240] sm:$0xff]
        %v242 = vmul.f32 %v241, 0.19999999
        %v243 = vadd.f32 %v239, %v242
        %v244 = vstv %s194
        %v245 = vmul.f32 %v237, %v244
        %s246 = scalar_lea.vmem %s169, 32 [#allocation6]
        %v247 = vld [vmem:[%s246] sm:$0xff]
        %v248 = vmul.f32 %v247, 0.19999999
        %v249 = vadd.f32 %v245, %v248
        %v250 = vsub.f32 %v243, 1.0
        %v251 = vstv %s196
        %v252 = vmul.f32 %v250, %v251
        %v253 = vsub.f32 1.0, %v249
        %v254 = vstv %s198
        %v255 = vmul.f32 %v253, %v254
        %v256 = vstv %s206
        %v257 = vmul.f32 %v256, %v252
        %v258 = vstv %s208
        %v259 = vmul.f32 %v258, %v255
        %v260 = vadd.f32 %v257, %v259
        %v261 = vstv %s210
        %v262 = vsub.f32 %v260, %v261
        %v263 = vstv %s212
        %v264 = vmul.f32 %v263, %v252
        %v265 = vstv %s214
        %v266 = vmul.f32 %v265, %v255
        %v267 = vadd.f32 %v264, %v266
        %v268 = vstv %s216
        %v269 = vsub.f32 %v267, %v268
        %v270 = vstv %s218
        %v271 = vmul.f32 %v270, %v252
        %v272 = vstv %s220
        %v273 = vmul.f32 %v272, %v255
        %v274 = vadd.f32 %v271, %v273
        %v275 = vstv %s222
        %v276 = vsub.f32 %v274, %v275
        %v277 = vmul.f32 %v262, %v262
        %v278 = vmul.f32 %v269, %v269
        %v279 = vadd.f32 %v277, %v278
        %v280 = vmul.f32 %v276, %v276
        %v281 = vadd.f32 %v279, %v280
        %v282 = vmax.f32 %v281, 1e-24
        %v283 = vrsqrt.pop %v282
        %s284 = scalar_lea.vmem %s169, 40 [#allocation6]
        %v285 = vld [vmem:[%s284] sm:$0xff]
        %v286 = vadd.f32 %v285, 1.85
        %v287 = vmul.f32 %v262, %v283
        %v288 = vmul.f32 %v286, %v287
        %v289 = vstv %s200
        %v290 = vadd.f32 %v289, %v288
        %291 = vst [vmem:[%s190] sm:$0xff] %v290
        %v292 = vmul.f32 %v269, %v283
        %v293 = vmul.f32 %v286, %v292
        %v294 = vstv %s202
        %v295 = vadd.f32 %v294, %v293
        %s296 = scalar_lea.vmem %s190, 8 [#allocation7]
        %297 = vst [vmem:[%s296] sm:$0xff] %v295
        %v298 = vmul.f32 %v276, %v283
        %v299 = vmul.f32 %v286, %v298
        %v300 = vstv %s204
        %v301 = vadd.f32 %v300, %v299
        %s302 = scalar_lea.vmem %s190, 16 [#allocation7]
        %303 = vst [vmem:[%s302] sm:$0xff] %v301
        %v304 = vld [vmem:[%s169] sm:$0xff]
        %v305 = vld [vmem:[%s169 + $0x8] sm:$0xff]
        %v306 = vld [vmem:[%s169 + $0x10] sm:$0xff]
        %v307 = vmul.f32 %v304, 0.35449076
        %v308 = vmul.f32 %v305, 0.35449076
        %v309 = vmul.f32 %v306, 0.35449076
        %s310 = scalar_lea.vmem %s190, 24 [#allocation7]
        %311 = vst [vmem:[%s310] sm:$0xff] %v307
        %312 = vst [vmem:[%s310 + $0x8] sm:$0xff] %v308
        %313 = vst [vmem:[%s310 + $0x10] sm:$0xff] %v309
        %s314 = scalar_lea.vmem %s169, 48 [#allocation6]
        %v315 = vld [vmem:[%s314] sm:$0xff]
        %v316 = vadd.f32 %v315, -4.59512
        %v317 = vxor.u32 %v316, 2147483648
        %v318 = vmul.f32 %v317, 1.442695
        %v319 = vpow.pop %v318
        %v320 = vadd.f32 %v319, 1.0
        %v321 = vrcp.pop %v320
        %v322 = vmul.f32 1.0, %v321
        %s323 = scalar_lea.vmem %s190, 48 [#allocation7]
        %324 = vst [vmem:[%s323] sm:$0xff] %v322
        %s325 = scalar_lea.vmem %s169, 56 [#allocation6]
        %v326 = vld [vmem:[%s325] sm:$0xff]
        %v327 = vld [vmem:[%s325 + $0x8] sm:$0xff]
        %v328 = vld [vmem:[%s325 + $0x10] sm:$0xff]
        %v329 = vmul.f32 %v326, 0.099999994
        %v330 = vmul.f32 %v327, 0.099999994
        %v331 = vmul.f32 %v328, 0.099999994
        %v332 = vadd.f32 %v329, -4.6051702
        %v333 = vadd.f32 %v330, -4.6051702
        %v334 = vadd.f32 %v331, -4.6051702
        %v335 = vmul.f32 %v332, 1.442695
        %v336 = vpow.pop %v335
        %v337 = vmul.f32 %v333, 1.442695
        %v338 = vpow.pop %v337
        %v339 = vmul.f32 %v334, 1.442695
        %v340 = vpow.pop %v339
        %s341 = scalar_lea.vmem %s190, 56 [#allocation7]
        %342 = vst [vmem:[%s341] sm:$0xff] %v336
        %343 = vst [vmem:[%s341 + $0x8] sm:$0xff] %v338
        %344 = vst [vmem:[%s341 + $0x10] sm:$0xff] %v340
        %s345 = scalar_lea.vmem %s169, 80 [#allocation6]
        %v346 = vld [vmem:[%s345] sm:$0xff]
        %v347 = vmul.f32 %v346, 0.099999994
        %v348 = vadd.f32 %v347, 1.0
        %s349 = scalar_lea.vmem %s169, 88 [#allocation6]
        %v350 = vld [vmem:[%s349] sm:$0xff]
        %v351 = vmul.f32 %v350, 0.099999994
        %s352 = scalar_lea.vmem %s169, 96 [#allocation6]
        %v353 = vld [vmem:[%s352] sm:$0xff]
        %v354 = vmul.f32 %v353, 0.099999994
        %s355 = scalar_lea.vmem %s169, 104 [#allocation6]
        %v356 = vld [vmem:[%s355] sm:$0xff]
        %v357 = vmul.f32 %v356, 0.099999994
        %v358 = vmul.f32 %v348, %v348
        %v359 = vmul.f32 %v351, %v351
        %v360 = vadd.f32 %v358, %v359
        %v361 = vmul.f32 %v354, %v354
        %v362 = vadd.f32 %v360, %v361
        %v363 = vmul.f32 %v357, %v357
        %v364 = vadd.f32 %v362, %v363
        %v365 = vmax.f32 %v364, 1e-24
        %v366 = vrsqrt.pop %v365
        %v367 = vmul.f32 %v348, %v366
        %s368 = scalar_lea.vmem %s190, 80 [#allocation7]
        %369 = vst [vmem:[%s368] sm:$0xff] %v367
        %v370 = vmul.f32 %v351, %v366
        %s371 = scalar_lea.vmem %s190, 88 [#allocation7]
        %372 = vst [vmem:[%s371] sm:$0xff] %v370
        %v373 = vmul.f32 %v354, %v366
        %s374 = scalar_lea.vmem %s190, 96 [#allocation7]
        %375 = vst [vmem:[%s374] sm:$0xff] %v373
        %v376 = vmul.f32 %v357, %v366
        %s377 = scalar_lea.vmem %s190, 104 [#allocation7]
        %378 = vst [vmem:[%s377] sm:$0xff] %v376
        %s379 = sand.u32 %s91, 1
        %s380 = scalar_lea.sflag [#allocation4], %s379
        %s381 = sand.u32 %s91, 1
        %s382 = smul.addr %s381, 112
        %s383 = scalar_lea.vmem [#allocation7], %s382
        // Predicated region
        $region37: #{tpu_custom_call.1} parent=27 // pred_check
          %p384 = pneg %p101
        $region38: #{tpu_custom_call.1} parent=27 // pred_check_branch
          %386 = sbr.rel (%p384) target = $region40
        $region39: #{tpu_custom_call.1} parent=27 // pred_region
          %s388 = ssub.s32 1792, 1792
          %389 = vsyncadd %s380, %s388
          %s390 = smul.addr %s25, 28
          %s391 = sadd.s32 %s24, %s390
          %s392 = smul.addr %s391, 128
          %s393 = scalar_lea.hbm %s2, %s392
          %s394 = sshll.u32 %s383, 4
          %s395 = int_to_ptr.vmem [resolvable:$true] %s394
          %400 = dma.vmem_to_hbm [thread:$0]  %s395, 1792, %s393, %s380, 128, 256, 8
        $region40: #{tpu_custom_call.1} parent=27 // pred_fallthru
          _
      $region28: #{tpu_custom_call.1} parent=5 // pred_fallthru
        _
      %p401 = scmp.le.s32.totalorder 2, %s15
      // Predicated region
      $region41: #{tpu_custom_call.1} parent=5 // pred_check
        %p402 = pneg %p401
      $region42: #{tpu_custom_call.1} parent=5 // pred_check_branch
        %404 = sbr.rel (%p402) target = $region44
      $region43: #{tpu_custom_call.1} parent=5 // pred_region
        %s405 = ssub.s32 %s15, 2
        // Predicated region
        $region45: #{tpu_custom_call.1} parent=43 // pred_check
          %p406 = pneg %p107
        $region46: #{tpu_custom_call.1} parent=43 // pred_check_branch
          %408 = sbr.rel (%p406) target = $region48
        $region47: #{tpu_custom_call.1} parent=43 // pred_region
          %s409 = sand.u32 %s92, 1
          %s410 = scalar_lea.sflag [#allocation4], %s409
          %s411 = sand.u32 %s92, 1
          %s412 = smul.addr %s411, 112
          %s413 = scalar_lea.vmem [#allocation7], %s412
          %414 = dma.done %s410, 1792
        $region48: #{tpu_custom_call.1} parent=43 // pred_fallthru
          _
      $region44: #{tpu_custom_call.1} parent=5 // pred_fallthru
        _
    $region6: #{tpu_custom_call.1} parent=1 // loop_footer
      %s19 = sadd.s32 1, %s15
    $region7: #{tpu_custom_call.1} parent=1 // loop_footer_branch
      %14 = sbr.rel target = $region3
    $region8: #{tpu_custom_call.1} parent=1 // loop_exit
      _
    %415 = vsyncpa [#allocation3], 1
    %s416 = scalar_lea.sflag [#allocation3], 1
    %417 = vsyncpa %s416, 1
    %418 = vsyncpa [#allocation4], 1
    %s419 = scalar_lea.sflag [#allocation4], 1
    %420 = vsyncpa %s419, 1
    %421 = vsyncpa [#allocation5], 1
    %s422 = scalar_lea.sflag [#allocation5], 1
    %423 = vsyncpa %s422, 1

</llo_original>
